<compile_context>
chip_gen: v5e
topology: v5e:2x2
jax: 0.10.0
libtpu: 0.0.40
codegen_flags: <defaults>
</compile_context>

<pallas_src>
import functools

import jax
import jax.numpy as jnp
from jax import lax
from jax.experimental import pallas as pl
from jax.experimental.pallas import tpu as pltpu


def _cqn_kernel(state_ref, pref_ref, w_ref, b_ref, q_ref, *, state_size):
    """q = [state, pref] @ W^T + b, without materializing the concat.

    state_ref: (bm, S)   pref_ref: (bm, R)
    w_ref:     (A, S+R)  -- PyTorch nn.Linear layout, NOT pre-transposed
    b_ref:     (1, A)
    q_ref:     (bm, A)
    """
    w = w_ref[...]
    w_s = w[:, :state_size]          # (A, S)
    w_r = w[:, state_size:]          # (A, R)
    # Contract feature dim of the activations against dim 1 of the (A, K)
    # weight slices -> (bm, A); accumulate in f32 on the MXU.
    dn = (((1,), (1,)), ((), ()))
    q = lax.dot_general(state_ref[...], w_s, dn,
                        preferred_element_type=jnp.float32)
    q = q + lax.dot_general(pref_ref[...], w_r, dn,
                            preferred_element_type=jnp.float32)
    q = q + b_ref[...]
    q_ref[...] = q.astype(q_ref.dtype)


def naive_onelayer_cqn_forward(state, preference, weight, bias, *, block_b=512):
    """Forward pass of NaiveOnelayerCQN.

    state:      (B, state_size)                          float32
    preference: (B, reward_size)                         float32
    weight:     (action_size, state_size + reward_size)  (nn.Linear layout)
    bias:       (action_size,)
    returns (hq, q) with hq: (B,), q: (B, action_size)
    """
    B, S = state.shape
    _, R = preference.shape
    A, K = weight.shape
    assert K == S + R, "weight shape must be (action, state+reward)"

    b2 = bias.reshape(1, A)  # 2-D for a TPU-friendly broadcast add
    kernel = functools.partial(_cqn_kernel, state_size=S)

    if B <= block_b:
        # Small batch: single un-gridded call, everything resident in VMEM.
        q = pl.pallas_call(
            kernel,
            out_shape=jax.ShapeDtypeStruct((B, A), jnp.float32),
            in_specs=[
                pl.BlockSpec(memory_space=pltpu.MemorySpace.VMEM),
                pl.BlockSpec(memory_space=pltpu.MemorySpace.VMEM),
                pl.BlockSpec(memory_space=pltpu.MemorySpace.VMEM),
                pl.BlockSpec(memory_space=pltpu.MemorySpace.VMEM),
            ],
            out_specs=pl.BlockSpec(memory_space=pltpu.MemorySpace.VMEM),
        )(state, preference, weight, b2)
    else:
        # Large batch: tile B, keep the tiny weight/bias VMEM-resident, and
        # mark the batch axis parallel (megacore sharding on v7x).
        bm = block_b
        grid = (pl.cdiv(B, bm),)
        q = pl.pallas_call(
            kernel,
            out_shape=jax.ShapeDtypeStruct((B, A), jnp.float32),
            grid=grid,
            in_specs=[
                pl.BlockSpec((bm, S), lambda i: (i, 0)),
                pl.BlockSpec((bm, R), lambda i: (i, 0)),
                pl.BlockSpec((A, K), lambda i: (0, 0)),   # resident weight
                pl.BlockSpec((1, A), lambda i: (0, 0)),   # resident bias
            ],
            out_specs=pl.BlockSpec((bm, A), lambda i: (i, 0)),
            compiler_params=pltpu.CompilerParams(
                dimension_semantics=("parallel",)),
        )(state, preference, weight, b2)

    # hq = q.detach().max(dim=1)[0]: detach is a no-op in the forward pass.
    # An 8-lane row max is trivial for XLA and fuses; doing it here avoids a
    # masked last-dim-1 store + extra DMA writeback inside the kernel.
    hq = jnp.max(q, axis=1)
    return hq, q


if __name__ == "__main__":
    state_size = 16
    reward_size = 4
    action_size = 8

    key = jax.random.PRNGKey(0)
    k_state, k_pref, k_w, k_b, k_state2, k_pref2 = jax.random.split(key, 6)

    # deterministic nn.Linear-style init (uniform in +/- 1/sqrt(fan_in))
    fan_in = state_size + reward_size
    bound = 1.0 / (fan_in ** 0.5)
    weight = jax.random.uniform(
        k_w, (action_size, fan_in), minval=-bound, maxval=bound,
        dtype=jnp.float32)
    bias = jax.random.uniform(
        k_b, (action_size,), minval=-bound, maxval=bound, dtype=jnp.float32)

    # ---- small batch (module's nominal shapes): un-gridded path ----
    B = 2
    state = jax.random.normal(k_state, (B, state_size), dtype=jnp.float32)
    preference = jax.random.normal(k_pref, (B, reward_size), dtype=jnp.float32)

    hq, q = naive_onelayer_cqn_forward(state, preference, weight, bias)
    jax.block_until_ready((hq, q))

    x_ref = jnp.concatenate((state, preference), axis=1)
    q_ref = x_ref @ weight.T + bias
    hq_ref = jnp.max(q_ref, axis=1)
    assert q.shape == (B, action_size) and hq.shape == (B,)
    assert jnp.allclose(q, q_ref, atol=1e-5), "q mismatch (small batch)"
    assert jnp.allclose(hq, hq_ref, atol=1e-5), "hq mismatch (small batch)"

    # ---- larger batch: exercise the tiled (grid) path ----
    B2 = 1024
    state2 = jax.random.normal(k_state2, (B2, state_size), dtype=jnp.float32)
    preference2 = jax.random.normal(
        k_pref2, (B2, reward_size), dtype=jnp.float32)

    hq2, q2 = naive_onelayer_cqn_forward(
        state2, preference2, weight, bias, block_b=256)
    jax.block_until_ready((hq2, q2))

    x2_ref = jnp.concatenate((state2, preference2), axis=1)
    q2_ref = x2_ref @ weight.T + bias
    hq2_ref = jnp.max(q2_ref, axis=1)
    assert jnp.allclose(q2, q2_ref, atol=1e-5), "q mismatch (tiled batch)"
    assert jnp.allclose(hq2, hq2_ref, atol=1e-5), "hq mismatch (tiled batch)"

    print("KERNEL_OK")
</pallas_src>

<mosaic_0001>
module attributes {stable_mosaic.version = 11 : i64} {
  func.func @_cqn_kernel(%arg0: memref<2x16xf32, #tpu.memory_space<vmem>>, %arg1: memref<2x4xf32, #tpu.memory_space<vmem>>, %arg2: memref<8x20xf32, #tpu.memory_space<vmem>>, %arg3: memref<1x8xf32, #tpu.memory_space<vmem>>, %arg4: memref<2x8xf32, #tpu.memory_space<vmem>>) attributes {dimension_semantics = [], scalar_prefetch = 0 : i64, scratch_operands = 0 : i64, tpu.core_type = #tpu.core_type<tc>} {
    %c0 = arith.constant 0 : index
    %c0_0 = arith.constant 0 : index
    %0 = vector.load %arg2[%c0, %c0_0] : memref<8x20xf32, #tpu.memory_space<vmem>>, vector<8x20xf32>
    %1 = vector.extract_strided_slice %0 {offsets = [0, 0], sizes = [8, 16], strides = [1, 1]} : vector<8x20xf32> to vector<8x16xf32>
    %2 = vector.extract_strided_slice %0 {offsets = [0, 16], sizes = [8, 4], strides = [1, 1]} : vector<8x20xf32> to vector<8x4xf32>
    %c0_1 = arith.constant 0 : index
    %c0_2 = arith.constant 0 : index
    %3 = vector.load %arg0[%c0_1, %c0_2] : memref<2x16xf32, #tpu.memory_space<vmem>>, vector<2x16xf32>
    %cst = arith.constant dense<0.000000e+00> : vector<2x8xf32>
    %4 = tpu.matmul %3, %1, %cst {dimension_numbers = #tpu.dot_dimension_numbers<[1], [1], [0], [0], [0, 0, 1, 0], [], []>} : vector<2x16xf32>, vector<8x16xf32>, vector<2x8xf32> -> vector<2x8xf32>
    %c0_3 = arith.constant 0 : index
    %c0_4 = arith.constant 0 : index
    %5 = vector.load %arg1[%c0_3, %c0_4] : memref<2x4xf32, #tpu.memory_space<vmem>>, vector<2x4xf32>
    %cst_5 = arith.constant dense<0.000000e+00> : vector<2x8xf32>
    %6 = tpu.matmul %5, %2, %cst_5 {dimension_numbers = #tpu.dot_dimension_numbers<[1], [1], [0], [0], [0, 0, 1, 0], [], []>} : vector<2x4xf32>, vector<8x4xf32>, vector<2x8xf32> -> vector<2x8xf32>
    %7 = arith.addf %4, %6 : vector<2x8xf32>
    %c0_6 = arith.constant 0 : index
    %c0_7 = arith.constant 0 : index
    %8 = vector.load %arg3[%c0_6, %c0_7] : memref<1x8xf32, #tpu.memory_space<vmem>>, vector<1x8xf32>
    %9 = vector.broadcast %8 : vector<1x8xf32> to vector<2x8xf32>
    %10 = arith.addf %7, %9 : vector<2x8xf32>
    %c0_8 = arith.constant 0 : index
    %c0_9 = arith.constant 0 : index
    %11 = vector.load %arg4[%c0_8, %c0_9] : memref<2x8xf32, #tpu.memory_space<vmem>>, vector<2x8xf32>
    tpu.vector_store %arg4[%c0_8, %c0_9], %10 {strides = array<i32>} : memref<2x8xf32, #tpu.memory_space<vmem>>, vector<2x8xf32>,
    return
  }
}

</mosaic_0001>

<llo_original>
// kernel: tpu_custom_call.1
$region0: #{tpu_custom_call.1}
  #allocation0 [shape = 'u32[]', space=smem, size = 0x4, offset = 0x4, fixed_abs, tag = 'smem constant byte address 0x4 - core index']
  #allocation1 [shape = 'u32[72,128]{1,0:T(1,128)}', space=vmem, size = 0x9000, scoped, tag = 'internal scratch']
  %s0 = inlined_call_operand.hbm [shape: f32[2,16], index: 0, kind: input, shape index: {}]
  %s1 = inlined_call_operand.hbm [shape: f32[2,4], index: 1, kind: input, shape index: {}]
  %s2 = inlined_call_operand.hbm [shape: f32[8,20], index: 2, kind: input, shape index: {}]
  %s3 = inlined_call_operand.vmem [shape: f32[1,8], index: 3, kind: input, shape index: {}]
  %s4 = inlined_call_operand.hbm [shape: f32[2,8], index: 4, kind: output, shape index: {}]
  %s5 = sld [smem:[#allocation0]]
  $region38: #{tpu_custom_call.1} parent=0
    _
  %s7 = ssub.s32 1, %s5
  %s8 = scalar_select 0, %s7, %s5
  $region1: #{tpu_custom_call.1} parent=0
    #allocation2 [shape = 'u8[1024]{0}', space=vmem, size = 0x400, scoped, tag = 'input window, operand 0, single buffered']
    #allocation3 [shape = 's32[1]{0}', space=sflag, size = 0x4, scoped, tag = 'scoped memory for tpu_custom_call.1']
    #allocation4 [shape = 's32[1]{0}', space=sflag, size = 0x4, scoped, tag = 'scoped memory for tpu_custom_call.1']
    #allocation5 [shape = 'u8[1024]{0}', space=vmem, size = 0x400, scoped, tag = 'input window, operand 1, single buffered']
    #allocation6 [shape = 's32[1]{0}', space=sflag, size = 0x4, scoped, tag = 'scoped memory for tpu_custom_call.1']
    #allocation7 [shape = 'u8[4096]{0}', space=vmem, size = 0x1000, scoped, tag = 'input window, operand 2, single buffered']
    #allocation8 [shape = 'u8[1024]{0}', space=vmem, size = 0x400, scoped, tag = 'output window, operand 0, single buffered']
    %9 = vsyncpa [#allocation3], 0
    %10 = vsyncpa [#allocation6], 0
    %11 = vsyncpa [#allocation4], 0
    // Predicated region
    $region2: #{tpu_custom_call.1} parent=1 // pred_check
      _
    $region3: #{tpu_custom_call.1} parent=1 // pred_check_branch
      %13 = sbr.rel (0) target = $region5
    $region4: #{tpu_custom_call.1} parent=1 // pred_region
      %15 = vsyncadd [#allocation3], 0
      %s17 = sshll.u32 %s0, 4
      %s18 = int_to_ptr.hbm [resolvable:$true] %s17
      %s19 = sshll.u32 [#allocation2], 4
      %s20 = int_to_ptr.vmem [resolvable:$true] %s19
      %22 = dma.hbm_to_vmem [thread:$0]  %s18, 32, %s20, [#allocation3]
    $region5: #{tpu_custom_call.1} parent=1 // pred_fallthru
      _
    // Predicated region
    $region6: #{tpu_custom_call.1} parent=1 // pred_check
      _
    $region7: #{tpu_custom_call.1} parent=1 // pred_check_branch
      %24 = sbr.rel (0) target = $region9
    $region8: #{tpu_custom_call.1} parent=1 // pred_region
      %26 = vsyncadd [#allocation6], 0
      %s28 = sshll.u32 %s1, 4
      %s29 = int_to_ptr.hbm [resolvable:$true] %s28
      %s30 = sshll.u32 [#allocation5], 4
      %s31 = int_to_ptr.vmem [resolvable:$true] %s30
      %33 = dma.hbm_to_vmem [thread:$0]  %s29, 32, %s31, [#allocation6]
    $region9: #{tpu_custom_call.1} parent=1 // pred_fallthru
      _
    // Predicated region
    $region10: #{tpu_custom_call.1} parent=1 // pred_check
      _
    $region11: #{tpu_custom_call.1} parent=1 // pred_check_branch
      %35 = sbr.rel (0) target = $region13
    $region12: #{tpu_custom_call.1} parent=1 // pred_region
      %37 = vsyncadd [#allocation6], 0
      %s39 = sshll.u32 %s2, 4
      %s40 = int_to_ptr.hbm [resolvable:$true] %s39
      %s41 = sshll.u32 [#allocation7], 4
      %s42 = int_to_ptr.vmem [resolvable:$true] %s41
      %44 = dma.hbm_to_vmem [thread:$0]  %s40, 128, %s42, [#allocation6]
    $region13: #{tpu_custom_call.1} parent=1 // pred_fallthru
      _
    // Predicated region
    $region14: #{tpu_custom_call.1} parent=1 // pred_check
      _
    $region15: #{tpu_custom_call.1} parent=1 // pred_check_branch
      %46 = sbr.rel (0) target = $region17
    $region16: #{tpu_custom_call.1} parent=1 // pred_region
      _
    $region17: #{tpu_custom_call.1} parent=1 // pred_fallthru
      _
    // Predicated region
    $region18: #{tpu_custom_call.1} parent=1 // pred_check
      _
    $region19: #{tpu_custom_call.1} parent=1 // pred_check_branch
      %48 = sbr.rel (0) target = $region21
    $region20: #{tpu_custom_call.1} parent=1 // pred_region
      %50 = dma.done [#allocation3], 32
    $region21: #{tpu_custom_call.1} parent=1 // pred_fallthru
      _
    // Predicated region
    $region22: #{tpu_custom_call.1} parent=1 // pred_check
      _
    $region23: #{tpu_custom_call.1} parent=1 // pred_check_branch
      %52 = sbr.rel (0) target = $region25
    $region24: #{tpu_custom_call.1} parent=1 // pred_region
      %54 = dma.done [#allocation6], 32
    $region25: #{tpu_custom_call.1} parent=1 // pred_fallthru
      _
    // Predicated region
    $region26: #{tpu_custom_call.1} parent=1 // pred_check
      _
    $region27: #{tpu_custom_call.1} parent=1 // pred_check_branch
      %56 = sbr.rel (0) target = $region29
    $region28: #{tpu_custom_call.1} parent=1 // pred_region
      %58 = dma.done [#allocation6], 128
    $region29: #{tpu_custom_call.1} parent=1 // pred_fallthru
      _
    %v59 = vld [vmem:[#allocation7] sm:$0xff]
    %v60 = vld [vmem:[#allocation2] sm:$0x3]
    %v61 = vld [vmem:[#allocation5] sm:$0x3]
    %63 = vrot.lane.b32.xlu0 %v59, 112
    %v64 = vpop.permute.xlu0 %63
    %vm65 = vcmask 31744
    %v67 = vsel %vm65, %v61, 0
    %v69 = vsel %vm65, %v64, 0
    %71 = vmatpush.xpose.msra.mxu0 0.0
    %72 = vmatpush.xpose.msra.mxu0 0.0
    %73 = vmatpush.xpose.msra.mxu0 0.0
    %74 = vmatpush.xpose.msra.mxu0 0.0
    %75 = vmatpush.xpose.msra.mxu0 0.0
    %76 = vmatpush.xpose.msra.mxu0 0.0
    %77 = vmatpush.xpose.msra.mxu0 0.0
    %78 = vmatpush.xpose.msra.mxu0 0.0
    %79 = vmatpush.xpose.msra.mxu0 0.0
    %80 = vmatpush.xpose.msra.mxu0 0.0
    %81 = vmatpush.xpose.msra.mxu0 0.0
    %82 = vmatpush.xpose.msra.mxu0 0.0
    %83 = vmatpush.xpose.msra.mxu0 0.0
    %84 = vmatpush.xpose.msra.mxu0 0.0
    %85 = vmatpush.xpose.msra.mxu0 0.0
    %86 = vmatpush.xpose.msra.mxu0 %v69
    %87 = vmatmul.f32.gmra.mxu0 %v67
    %v88 = vpop.f32.mrf.mxu0
    %v89 = vadd.f32 0.0, %v88
    %90 = vdwg.mxu0
    %vm91 = vcmask 130048
    %v93 = vsel %vm91, %v60, 0
    %v95 = vsel %vm91, %v59, 0
    %97 = vmatpush.xpose.msra.mxu0 0.0
    %98 = vmatpush.xpose.msra.mxu0 0.0
    %99 = vmatpush.xpose.msra.mxu0 0.0
    %100 = vmatpush.xpose.msra.mxu0 0.0
    %101 = vmatpush.xpose.msra.mxu0 0.0
    %102 = vmatpush.xpose.msra.mxu0 0.0
    %103 = vmatpush.xpose.msra.mxu0 0.0
    %104 = vmatpush.xpose.msra.mxu0 0.0
    %105 = vmatpush.xpose.msra.mxu0 0.0
    %106 = vmatpush.xpose.msra.mxu0 0.0
    %107 = vmatpush.xpose.msra.mxu0 0.0
    %108 = vmatpush.xpose.msra.mxu0 0.0
    %109 = vmatpush.xpose.msra.mxu0 0.0
    %110 = vmatpush.xpose.msra.mxu0 0.0
    %111 = vmatpush.xpose.msra.mxu0 0.0
    %112 = vmatpush.xpose.msra.mxu0 %v95
    %113 = vmatmul.f32.gmra.mxu0 %v93
    %v114 = vpop.f32.mrf.mxu0
    %v115 = vadd.f32 %v89, %v114
    %116 = vdwg.mxu0
    %v117 = vld [vmem:[%s3] sm:$0x1]
    %v119 = vperm.slane %v117, 0
    %v121 = vadd.f32 %v115, %v119
    %vm122 = vcmask 58368
    %123 = vst.msk [vmem:[#allocation8] sm:$0x3] %vm122, %v121
    // Predicated region
    $region30: #{tpu_custom_call.1} parent=1 // pred_check
      _
    $region31: #{tpu_custom_call.1} parent=1 // pred_check_branch
      %125 = sbr.rel (0) target = $region33
    $region32: #{tpu_custom_call.1} parent=1 // pred_region
      %127 = vsyncadd [#allocation4], 0
      %s129 = sshll.u32 [#allocation8], 4
      %s130 = int_to_ptr.vmem [resolvable:$true] %s129
      %s131 = sshll.u32 %s4, 4
      %s132 = int_to_ptr.hbm [resolvable:$true] %s131
      %134 = dma.vmem_to_hbm [thread:$0]  %s130, 32, %s132, [#allocation4]
    $region33: #{tpu_custom_call.1} parent=1 // pred_fallthru
      _
    // Predicated region
    $region34: #{tpu_custom_call.1} parent=1 // pred_check
      _
    $region35: #{tpu_custom_call.1} parent=1 // pred_check_branch
      %136 = sbr.rel (0) target = $region37
    $region36: #{tpu_custom_call.1} parent=1 // pred_region
      %138 = dma.done [#allocation4], 32
    $region37: #{tpu_custom_call.1} parent=1 // pred_fallthru
      _
    %139 = vsyncpa [#allocation3], 1
    %140 = vsyncpa [#allocation6], 1
    %141 = vsyncpa [#allocation4], 1

</llo_original>
